<compile_context>
chip_gen: v6e
topology: v6e:2x2x1
jax: 0.10.0
libtpu: 0.0.40
codegen_flags: <defaults>
</compile_context>

<pallas_src>
import functools

import jax
import jax.numpy as jnp
from jax.experimental import pallas as pl
from jax.experimental.pallas import tpu as pltpu

EMBED_DIM = 128   # SETTING['Cyclone']['embed_dim'] (synthetic, lane-friendly)
_MAX_TB = 2048    # rows per batch tile (bf16: 2048*128*2 B = 512 KiB per buffer)
_SUBLANE = 16     # bf16 sublane multiple for the (16,128) block constraint


def _round_up(x, m):
    return ((x + m - 1) // m) * m


def ode_f_kernel(y_ref, w1t_ref, w2t_ref, o_ref):
    """out = relu(y @ w1.T) @ w2.T for one batch tile, f32 accumulation.

    y_ref:   (TB, D) bf16 activations tile (streamed over the batch)
    w1t_ref: (D, D)  first Linear weight, pre-transposed to (in, out) layout
    w2t_ref: (D, D)  second Linear weight, pre-transposed to (in, out) layout
    o_ref:   (TB, D) bf16 output tile
    """
    h = jnp.dot(y_ref[...], w1t_ref[...], preferred_element_type=jnp.float32)
    h = jnp.maximum(h, 0.0)                                # ReLU on f32 accumulator
    out = jnp.dot(h.astype(w2t_ref.dtype), w2t_ref[...],   # bf16 into MXU, f32 acc
                  preferred_element_type=jnp.float32)
    o_ref[...] = out.astype(o_ref.dtype)


def _pick_tb(B):
    # Enough tiles to (a) stay under _MAX_TB rows per tile and (b) give the
    # "parallel" batch axis >= 2 steps for v7x's two TensorCores once B is
    # non-trivial, while keeping padding below one sublane-multiple per tile.
    n_tiles = pl.cdiv(B, _MAX_TB)
    if B > 256:
        n_tiles = max(n_tiles, 2)
    return min(_MAX_TB, _round_up(pl.cdiv(B, n_tiles), _SUBLANE))


@functools.partial(jax.jit, static_argnames=("tb",))
def ode_f_forward(t, y, w1, w2, *, tb=None):
    """forward(t, y) = net(y); t is ignored (matches the PyTorch module).

    y:  (B, D)  activations (any float dtype; cast to bf16 for I/O)
    w1: (D, D)  first Linear weight, PyTorch (out_features, in_features) layout
    w2: (D, D)  second Linear weight, PyTorch (out_features, in_features) layout
    Returns (B, D) bf16.
    """
    del t
    B, D = y.shape

    if tb is None:
        tb = _pick_tb(B)
    else:
        tb = max(_SUBLANE, _round_up(int(tb), _SUBLANE))   # enforce (16,128) blocks

    compute_dtype = jnp.bfloat16
    y_c = y.astype(compute_dtype)
    # One-time 128x128 transposes (32 KiB each in bf16): kernel then contracts
    # dim 1 of y with dim 0 of the resident weight blocks -> no per-step XLU work.
    w1t = w1.astype(compute_dtype).T
    w2t = w2.astype(compute_dtype).T

    Bp = _round_up(B, tb)
    y_p = y_c if Bp == B else jnp.pad(y_c, ((0, Bp - B), (0, 0)))
    n_steps = Bp // tb

    y_spec = pl.BlockSpec((tb, D), lambda i: (i, 0))
    if n_steps >= 3 and hasattr(pl, "Buffered"):
        try:   # deeper input pipelining hides HBM latency; optional, guarded
            y_spec = pl.BlockSpec((tb, D), lambda i: (i, 0),
                                  pipeline_mode=pl.Buffered(3))
        except TypeError:
            pass

    bytes_accessed = 2 * (2 * Bp * D + 2 * D * D)   # bf16: y + out + both weights

    out = pl.pallas_call(
        ode_f_kernel,
        out_shape=jax.ShapeDtypeStruct((Bp, D), compute_dtype),
        grid=(n_steps,),
        in_specs=[
            y_spec,                                   # y tile, streamed over B
            pl.BlockSpec((D, D), lambda i: (0, 0)),   # w1.T: VMEM-resident, no re-DMA
            pl.BlockSpec((D, D), lambda i: (0, 0)),   # w2.T: VMEM-resident, no re-DMA
        ],
        out_specs=pl.BlockSpec((tb, D), lambda i: (i, 0)),
        compiler_params=pltpu.CompilerParams(
            dimension_semantics=("parallel",),        # batch axis: megacore-shardable
        ),
        cost_estimate=pl.CostEstimate(
            flops=4 * Bp * D * D,
            transcendentals=0,
            bytes_accessed=bytes_accessed,
        ),
    )(y_p, w1t, w2t)

    return out if Bp == B else out[:B]


def reference_forward(y, w1, w2):
    # Pure-JAX reference mirroring PyTorch: Linear -> ReLU -> Linear (no bias),
    # computed in f32 from the same (bf16) inputs the kernel sees.
    yf = y.astype(jnp.float32)
    w1f = w1.astype(jnp.float32)
    w2f = w2.astype(jnp.float32)
    h = jnp.maximum(yf @ w1f.T, 0.0)
    return h @ w2f.T


if __name__ == "__main__":
    key = jax.random.PRNGKey(0)
    k_w1, k_w2, k_y1, k_y2, k_y3 = jax.random.split(key, 5)

    D = EMBED_DIM
    bound = 1.0 / (D ** 0.5)
    # nn.Linear(D, D, bias=False) weights in PyTorch (out, in) layout, bf16 I/O.
    w1 = jax.random.uniform(k_w1, (D, D), minval=-bound, maxval=bound,
                            dtype=jnp.float32).astype(jnp.bfloat16)
    w2 = jax.random.uniform(k_w2, (D, D), minval=-bound, maxval=bound,
                            dtype=jnp.float32).astype(jnp.bfloat16)
    t = jnp.float32(0.0)  # unused by forward

    def check(B, k, tb=None, tag=""):
        y = jax.random.normal(k, (B, D), dtype=jnp.float32).astype(jnp.bfloat16)
        out = jax.block_until_ready(ode_f_forward(t, y, w1, w2, tb=tb))
        ref = reference_forward(y, w1, w2)
        assert out.shape == (B, D), f"bad shape ({tag})"
        assert out.dtype == jnp.bfloat16, f"bad dtype ({tag})"
        assert jnp.allclose(out.astype(jnp.float32), ref, atol=3e-2, rtol=3e-2), \
            f"mismatch vs reference ({tag})"

    check(8, k_y1, tag="B=8 single tile")              # small batch, single tile
    check(20, k_y2, tb=16, tag="B=20 tiled+padded")    # explicit tb, padding path
    check(300, k_y3, tag="B=300 auto-tb, >=2 tiles")   # auto tb, 2 grid steps (v7x path)

    print("KERNEL_OK")
</pallas_src>

<mosaic_0001>
module attributes {stable_mosaic.version = 11 : i64} {
  func.func @ode_f_kernel(%arg0: i32, %arg1: memref<16x128xbf16, #tpu.memory_space<vmem>>, %arg2: memref<128x128xbf16, #tpu.memory_space<vmem>>, %arg3: memref<128x128xbf16, #tpu.memory_space<vmem>>, %arg4: memref<16x128xbf16, #tpu.memory_space<vmem>>) attributes {dimension_semantics = [#tpu.dimension_semantics<parallel>], iteration_bounds = array<i64: 1>, scalar_prefetch = 0 : i64, scratch_operands = 0 : i64, tpu.core_type = #tpu.core_type<tc>, window_params = [{transform_indices = @transform_0, window_bounds = array<i64: 16, 128>}, {pipeline_mode = #tpu.pipeline_mode<synchronous>, transform_indices = @transform_1, window_bounds = array<i64: 128, 128>}, {pipeline_mode = #tpu.pipeline_mode<synchronous>, transform_indices = @transform_2, window_bounds = array<i64: 128, 128>}, {transform_indices = @transform_3, window_bounds = array<i64: 16, 128>}]} {
    %c0 = arith.constant 0 : index
    %c0_0 = arith.constant 0 : index
    %0 = vector.load %arg1[%c0, %c0_0] : memref<16x128xbf16, #tpu.memory_space<vmem>>, vector<16x128xbf16>
    %c0_1 = arith.constant 0 : index
    %c0_2 = arith.constant 0 : index
    %1 = vector.load %arg2[%c0_1, %c0_2] : memref<128x128xbf16, #tpu.memory_space<vmem>>, vector<128x128xbf16>
    %cst = arith.constant dense<0.000000e+00> : vector<16x128xf32>
    %2 = tpu.matmul %0, %1, %cst {dimension_numbers = #tpu.dot_dimension_numbers<[1], [0], [0], [1], [0, 0, 1, 1], [], []>} : vector<16x128xbf16>, vector<128x128xbf16>, vector<16x128xf32> -> vector<16x128xf32>
    %cst_3 = arith.constant 0.000000e+00 : f32
    %3 = vector.broadcast %cst_3 : f32 to vector<16x128xf32>
    %4 = arith.maximumf %2, %3 : vector<16x128xf32>
    %5 = arith.truncf %4 : vector<16x128xf32> to vector<16x128xbf16>
    %c0_4 = arith.constant 0 : index
    %c0_5 = arith.constant 0 : index
    %6 = vector.load %arg3[%c0_4, %c0_5] : memref<128x128xbf16, #tpu.memory_space<vmem>>, vector<128x128xbf16>
    %cst_6 = arith.constant dense<0.000000e+00> : vector<16x128xf32>
    %7 = tpu.matmul %5, %6, %cst_6 {dimension_numbers = #tpu.dot_dimension_numbers<[1], [0], [0], [1], [0, 0, 1, 1], [], []>} : vector<16x128xbf16>, vector<128x128xbf16>, vector<16x128xf32> -> vector<16x128xf32>
    %8 = arith.truncf %7 : vector<16x128xf32> to vector<16x128xbf16>
    %c0_7 = arith.constant 0 : index
    %c0_8 = arith.constant 0 : index
    %9 = vector.load %arg4[%c0_7, %c0_8] : memref<16x128xbf16, #tpu.memory_space<vmem>>, vector<16x128xbf16>
    tpu.vector_store %arg4[%c0_7, %c0_8], %8 {strides = array<i32>} : memref<16x128xbf16, #tpu.memory_space<vmem>>, vector<16x128xbf16>,
    return
  }
  func.func @transform_0(%arg0: i32) -> (i32, i32) {
    %c0_i32 = arith.constant 0 : i32
    %c0_i32_0 = arith.constant 0 : i32
    return %arg0, %c0_i32 : i32, i32
  }
  func.func @transform_1(%arg0: i32) -> (i32, i32) {
    %c0_i32 = arith.constant 0 : i32
    %c0_i32_0 = arith.constant 0 : i32
    %c0_i32_1 = arith.constant 0 : i32
    return %c0_i32, %c0_i32_0 : i32, i32
  }
  func.func @transform_2(%arg0: i32) -> (i32, i32) {
    %c0_i32 = arith.constant 0 : i32
    %c0_i32_0 = arith.constant 0 : i32
    %c0_i32_1 = arith.constant 0 : i32
    return %c0_i32, %c0_i32_0 : i32, i32
  }
  func.func @transform_3(%arg0: i32) -> (i32, i32) {
    %c0_i32 = arith.constant 0 : i32
    %c0_i32_0 = arith.constant 0 : i32
    return %arg0, %c0_i32 : i32, i32
  }
}

</mosaic_0001>

<llo_original>
// kernel: ode_f_forward.1
$region0: #{ode_f_forward.1}
  #allocation0 [shape = 'u32[]', space=smem, size = 0x4, offset = 0x4, fixed_abs, tag = 'smem constant byte address 0x4 - core index']
  #allocation1 [shape = 'u32[144,128]{1,0:T(1,128)}', space=vmem, size = 0x12000, scoped, tag = 'internal scratch']
  %s0 = inlined_call_operand.vmem [shape: bf16[16,128], index: 0, kind: input, shape index: {}]
  %s1 = inlined_call_operand.vmem [shape: bf16[128,128], index: 1, kind: input, shape index: {}]
  %s2 = inlined_call_operand.vmem [shape: bf16[128,128], index: 2, kind: input, shape index: {}]
  %s3 = inlined_call_operand.vmem [shape: bf16[16,128], index: 3, kind: output, shape index: {}]
  %s4 = sld [smem:[#allocation0]]
  $region22: #{ode_f_forward.1} parent=0
    _
  %s6 = ssub.s32 1, %s4
  %s7 = scalar_select 0, %s6, %s4
  // Predicated region
  $region2: #{ode_f_forward.1} parent=0 // pred_check
    _
  $region3: #{ode_f_forward.1} parent=0 // pred_check_branch
    %9 = sbr.rel (0) target = $region5
  $region4: #{ode_f_forward.1} parent=0 // pred_region
    _
  $region5: #{ode_f_forward.1} parent=0 // pred_fallthru
    _
  // Predicated region
  $region6: #{ode_f_forward.1} parent=0 // pred_check
    _
  $region7: #{ode_f_forward.1} parent=0 // pred_check_branch
    %11 = sbr.rel (0) target = $region9
  $region8: #{ode_f_forward.1} parent=0 // pred_region
    _
  $region9: #{ode_f_forward.1} parent=0 // pred_fallthru
    _
  // Predicated region
  $region10: #{ode_f_forward.1} parent=0 // pred_check
    _
  $region11: #{ode_f_forward.1} parent=0 // pred_check_branch
    %13 = sbr.rel (0) target = $region13
  $region12: #{ode_f_forward.1} parent=0 // pred_region
    _
  $region13: #{ode_f_forward.1} parent=0 // pred_fallthru
    _
  %v15 = vld [vmem:[%s0] sm:$0xf]
  %v16 = vld [vmem:[%s0 + $0x4] sm:$0xf]
  %v17 = vld [vmem:[%s1] sm:$0xf]
  %v18 = vld [vmem:[%s1 + $0x4] sm:$0xf]
  %v19 = vld [vmem:[%s1 + $0x8] sm:$0xf]
  %v20 = vld [vmem:[%s1 + $0xc] sm:$0xf]
  %v21 = vld [vmem:[%s1 + $0x10] sm:$0xf]
  %v22 = vld [vmem:[%s1 + $0x14] sm:$0xf]
  %v23 = vld [vmem:[%s1 + $0x18] sm:$0xf]
  %v24 = vld [vmem:[%s1 + $0x1c] sm:$0xf]
  %v25 = vld [vmem:[%s1 + $0x20] sm:$0xf]
  %v26 = vld [vmem:[%s1 + $0x24] sm:$0xf]
  %v27 = vld [vmem:[%s1 + $0x28] sm:$0xf]
  %v28 = vld [vmem:[%s1 + $0x2c] sm:$0xf]
  %v29 = vld [vmem:[%s1 + $0x30] sm:$0xf]
  %v30 = vld [vmem:[%s1 + $0x34] sm:$0xf]
  %v31 = vld [vmem:[%s1 + $0x38] sm:$0xf]
  %v32 = vld [vmem:[%s1 + $0x3c] sm:$0xf]
  %v35 = vunpack.c.l.b16 %v15
  %v36 = vunpack.c.l.b16 %v16
  %v37 = vpack.c.b16 %v36, %v35
  %v55 = vunpack.c.l.b16 %v17
  %v56 = vunpack.c.l.b16 %v18
  %v57 = vunpack.c.l.b16 %v19
  %v58 = vunpack.c.l.b16 %v20
  %v59 = vunpack.c.l.b16 %v21
  %v60 = vunpack.c.l.b16 %v22
  %v61 = vunpack.c.l.b16 %v23
  %v62 = vunpack.c.l.b16 %v24
  %v63 = vunpack.c.l.b16 %v25
  %v64 = vunpack.c.l.b16 %v26
  %v65 = vunpack.c.l.b16 %v27
  %v66 = vunpack.c.l.b16 %v28
  %v67 = vunpack.c.l.b16 %v29
  %v68 = vunpack.c.l.b16 %v30
  %v69 = vunpack.c.l.b16 %v31
  %v70 = vunpack.c.l.b16 %v32
  %v71 = vpack.c.b16 %v56, %v55
  %v72 = vpack.c.b16 %v58, %v57
  %v73 = vpack.c.b16 %v60, %v59
  %v74 = vpack.c.b16 %v62, %v61
  %v75 = vpack.c.b16 %v64, %v63
  %v76 = vpack.c.b16 %v66, %v65
  %v77 = vpack.c.b16 %v68, %v67
  %v78 = vpack.c.b16 %v70, %v69
  %87 = vmatprep.subr.bf16.mxu0 0
  %88 = vmatpush1.bf16.msra.mxu0 %v78
  %89 = vmatprep.subr.bf16.mxu0 0
  %90 = vmatpush1.bf16.msra.mxu0 %v77
  %91 = vmatprep.subr.bf16.mxu0 0
  %92 = vmatpush1.bf16.msra.mxu0 %v76
  %93 = vmatprep.subr.bf16.mxu0 0
  %94 = vmatpush1.bf16.msra.mxu0 %v75
  %95 = vmatprep.subr.bf16.mxu0 0
  %96 = vmatpush1.bf16.msra.mxu0 %v74
  %97 = vmatprep.subr.bf16.mxu0 0
  %98 = vmatpush1.bf16.msra.mxu0 %v73
  %99 = vmatprep.subr.bf16.mxu0 0
  %100 = vmatpush1.bf16.msra.mxu0 %v72
  %101 = vmatprep.subr.bf16.mxu0 0
  %102 = vmatpush1.bf16.msra.mxu0 %v71
  %103 = vmatprep.subr.bf16.mxu0 0
  %104 = vmatpush2.bf16.msra.mxu0 0
  %105 = vmatprep.subr.bf16.mxu0 0
  %106 = vmatpush2.bf16.msra.mxu0 0
  %107 = vmatprep.subr.bf16.mxu0 0
  %108 = vmatpush2.bf16.msra.mxu0 0
  %109 = vmatprep.subr.bf16.mxu0 0
  %110 = vmatpush2.bf16.msra.mxu0 0
  %111 = vmatprep.subr.bf16.mxu0 0
  %112 = vmatpush2.bf16.msra.mxu0 0
  %113 = vmatprep.subr.bf16.mxu0 0
  %114 = vmatpush2.bf16.msra.mxu0 0
  %115 = vmatprep.subr.bf16.mxu0 0
  %116 = vmatpush2.bf16.msra.mxu0 0
  %117 = vmatprep.subr.bf16.mxu0 0
  %118 = vmatpush2.bf16.msra.mxu0 0
  %119 = vmatprep.mubr.bf16.mxu0 0
  %120 = vmatmul.mubr.bf16.gmra.mxu0 %v37
  %v121 = vpop.f32.mrf.mxu0
  %v122 = vadd.f32 0.0, %v121
  %v123 = vpop.f32.mrf.mxu0
  %v124 = vpop.f32.mrf.mxu0
  %v125 = vadd.f32 0.0, %v124
  %v126 = vpop.f32.mrf.mxu0
  %127 = vdwg.mxu0
  %v128 = vmax.f32 %v122, 0.0
  %v129 = vmax.f32 %v125, 0.0
  %v130 = vpack.c.bf16 %v129, %v128
  %v131 = vld [vmem:[%s2] sm:$0xf]
  %v132 = vld [vmem:[%s2 + $0x4] sm:$0xf]
  %v133 = vld [vmem:[%s2 + $0x8] sm:$0xf]
  %v134 = vld [vmem:[%s2 + $0xc] sm:$0xf]
  %v135 = vld [vmem:[%s2 + $0x10] sm:$0xf]
  %v136 = vld [vmem:[%s2 + $0x14] sm:$0xf]
  %v137 = vld [vmem:[%s2 + $0x18] sm:$0xf]
  %v138 = vld [vmem:[%s2 + $0x1c] sm:$0xf]
  %v139 = vld [vmem:[%s2 + $0x20] sm:$0xf]
  %v140 = vld [vmem:[%s2 + $0x24] sm:$0xf]
  %v141 = vld [vmem:[%s2 + $0x28] sm:$0xf]
  %v142 = vld [vmem:[%s2 + $0x2c] sm:$0xf]
  %v143 = vld [vmem:[%s2 + $0x30] sm:$0xf]
  %v144 = vld [vmem:[%s2 + $0x34] sm:$0xf]
  %v145 = vld [vmem:[%s2 + $0x38] sm:$0xf]
  %v146 = vld [vmem:[%s2 + $0x3c] sm:$0xf]
  %v163 = vunpack.c.l.b16 %v131
  %v164 = vunpack.c.l.b16 %v132
  %v165 = vunpack.c.l.b16 %v133
  %v166 = vunpack.c.l.b16 %v134
  %v167 = vunpack.c.l.b16 %v135
  %v168 = vunpack.c.l.b16 %v136
  %v169 = vunpack.c.l.b16 %v137
  %v170 = vunpack.c.l.b16 %v138
  %v171 = vunpack.c.l.b16 %v139
  %v172 = vunpack.c.l.b16 %v140
  %v173 = vunpack.c.l.b16 %v141
  %v174 = vunpack.c.l.b16 %v142
  %v175 = vunpack.c.l.b16 %v143
  %v176 = vunpack.c.l.b16 %v144
  %v177 = vunpack.c.l.b16 %v145
  %v178 = vunpack.c.l.b16 %v146
  %v179 = vpack.c.b16 %v164, %v163
  %v180 = vpack.c.b16 %v166, %v165
  %v181 = vpack.c.b16 %v168, %v167
  %v182 = vpack.c.b16 %v170, %v169
  %v183 = vpack.c.b16 %v172, %v171
  %v184 = vpack.c.b16 %v174, %v173
  %v185 = vpack.c.b16 %v176, %v175
  %v186 = vpack.c.b16 %v178, %v177
  %195 = vmatprep.subr.bf16.mxu0 0
  %196 = vmatpush1.bf16.msra.mxu0 %v186
  %197 = vmatprep.subr.bf16.mxu0 0
  %198 = vmatpush1.bf16.msra.mxu0 %v185
  %199 = vmatprep.subr.bf16.mxu0 0
  %200 = vmatpush1.bf16.msra.mxu0 %v184
  %201 = vmatprep.subr.bf16.mxu0 0
  %202 = vmatpush1.bf16.msra.mxu0 %v183
  %203 = vmatprep.subr.bf16.mxu0 0
  %204 = vmatpush1.bf16.msra.mxu0 %v182
  %205 = vmatprep.subr.bf16.mxu0 0
  %206 = vmatpush1.bf16.msra.mxu0 %v181
  %207 = vmatprep.subr.bf16.mxu0 0
  %208 = vmatpush1.bf16.msra.mxu0 %v180
  %209 = vmatprep.subr.bf16.mxu0 0
  %210 = vmatpush1.bf16.msra.mxu0 %v179
  %211 = vmatprep.subr.bf16.mxu0 0
  %212 = vmatpush2.bf16.msra.mxu0 0
  %213 = vmatprep.subr.bf16.mxu0 0
  %214 = vmatpush2.bf16.msra.mxu0 0
  %215 = vmatprep.subr.bf16.mxu0 0
  %216 = vmatpush2.bf16.msra.mxu0 0
  %217 = vmatprep.subr.bf16.mxu0 0
  %218 = vmatpush2.bf16.msra.mxu0 0
  %219 = vmatprep.subr.bf16.mxu0 0
  %220 = vmatpush2.bf16.msra.mxu0 0
  %221 = vmatprep.subr.bf16.mxu0 0
  %222 = vmatpush2.bf16.msra.mxu0 0
  %223 = vmatprep.subr.bf16.mxu0 0
  %224 = vmatpush2.bf16.msra.mxu0 0
  %225 = vmatprep.subr.bf16.mxu0 0
  %226 = vmatpush2.bf16.msra.mxu0 0
  %227 = vmatprep.mubr.bf16.mxu0 0
  %228 = vmatmul.mubr.bf16.gmra.mxu0 %v130
  %v229 = vpop.f32.mrf.mxu0
  %v230 = vadd.f32 0.0, %v229
  %v231 = vpop.f32.mrf.mxu0
  %v232 = vpop.f32.mrf.mxu0
  %v233 = vadd.f32 0.0, %v232
  %v234 = vpop.f32.mrf.mxu0
  %235 = vdwg.mxu0
  %v236 = vpack.c.bf16 %v233, %v230
  %v238 = vunpack.c.l.b16 %v236
  %v239 = vunpack.c.h.b16 %v236
  %v240 = vpack.c.b16 %v238, %v238
  %v241 = vpack.c.b16 %v239, %v239
  %244 = vst [vmem:[%s3] sm:$0xf] %v240
  %245 = vst [vmem:[%s3 + $0x4] sm:$0xf] %v241
  // Predicated region
  $region14: #{ode_f_forward.1} parent=0 // pred_check
    _
  $region15: #{ode_f_forward.1} parent=0 // pred_check_branch
    %247 = sbr.rel (0) target = $region17
  $region16: #{ode_f_forward.1} parent=0 // pred_region
    _
  $region17: #{ode_f_forward.1} parent=0 // pred_fallthru
    _
  // Predicated region
  $region18: #{ode_f_forward.1} parent=0 // pred_check
    _
  $region19: #{ode_f_forward.1} parent=0 // pred_check_branch
    %249 = sbr.rel (0) target = $region21
  $region20: #{ode_f_forward.1} parent=0 // pred_region
    _
  $region21: #{ode_f_forward.1} parent=0 // pred_fallthru
    _

</llo_original>
